<compile_context>
chip_gen: v5e
topology: v5e:2x2
jax: 0.10.0
libtpu: 0.0.40
codegen_flags: <defaults>
</compile_context>

<pallas_src>
import numpy as np
import jax
import jax.numpy as jnp
from jax.experimental import pallas as pl
from jax.experimental.pallas import tpu as pltpu

ALPHA = 0.25
GAMMA = 2.0  # hard-wired as a square in the kernel
LANES = 128


def _cdiv(a, b):
    return (a + b - 1) // b


def _round_up(a, b):
    return _cdiv(a, b) * b


def _num_tensorcores():
    """Best-effort TensorCore count (2 on megacore-style chips, else 1)."""
    try:
        info = pltpu.get_tpu_info()
        for attr in ("num_cores", "core_count", "num_tensorcores", "tensorcore_count"):
            v = getattr(info, attr, None)
            if isinstance(v, int) and 1 <= v <= 8:
                return v
    except Exception:
        pass
    return 1


def _make_focal_kernel(TR, blocks_per_p, rows_valid_total):
    def kernel(x_ref, y_ref, out_ref):
        p = pl.program_id(0)
        i = pl.program_id(1)

        @pl.when(i == 0)
        def _():
            out_ref[...] = jnp.zeros_like(out_ref)

        x = x_ref[...].astype(jnp.float32)
        y = y_ref[...].astype(jnp.float32)

        # Shared transcendentals: one exp, one log1p, one approx reciprocal per element.
        a = jnp.abs(x)
        e = jnp.exp(-a)                    # exp(-|x|) in (0, 1]
        l = jnp.log1p(e)                   # log(1 + exp(-|x|))
        d = 1.0 + e
        r = pl.reciprocal(d, approx=True)  # EUP vrcp seed
        inv = r * (2.0 - d * r)            # one Newton step -> ~f32-exact 1/(1+e)

        # sigmoid(x): 1/(1+e) for x >= 0, e/(1+e) for x < 0.
        probs = jnp.where(x >= 0.0, inv, e * inv)

        # Stable log(sigmoid(x)); log(1-sigmoid(x)) via the exact identity lp - x.
        # Equivalent to the PyTorch where(x>=0, softplus(x,-1,50), x-softplus(x,1,50)).
        log_probs = jnp.minimum(x, 0.0) - l
        log_1_probs = log_probs - x

        diff = y - probs
        coeff = -(diff * diff)             # gamma == 2 -> plain VPU square

        # loss = coeff * (y*A*lp + (1-y)*(1-A)*l1p), factored to drop the (1-y) multiply.
        b = (1.0 - ALPHA) * log_1_probs
        loss = coeff * (b + y * (ALPHA * log_probs - b))

        block = p * blocks_per_p + i       # un-clamped logical block id
        row_start = block * TR
        fully_valid = row_start + TR <= rows_valid_total

        # Sublane-aligned VPU-only partial reduction into the resident (1,8,128)
        # output block; the single cross-lane reduce happens outside the kernel.
        @pl.when(fully_valid)
        def _():
            out_ref[...] += jnp.sum(loss.reshape(1, TR // 8, 8, LANES), axis=1)

        @pl.when(jnp.logical_not(fully_valid))
        def _():
            # Ragged tail block (or over-provisioned parallel step): zero invalid rows.
            row_ids = jax.lax.broadcasted_iota(jnp.int32, (TR, LANES), 0)
            rows_left = rows_valid_total - row_start
            masked = jnp.where(row_ids < rows_left, loss, 0.0)
            out_ref[...] += jnp.sum(masked.reshape(1, TR // 8, 8, LANES), axis=1)

    return kernel


def focal_loss_v1(logits, label, reduction="mean"):
    """Pallas implementation of FocalLossV1.forward (alpha=0.25, gamma=2)."""
    assert logits.shape == label.shape
    total = int(np.prod(logits.shape))

    # Keep labels narrow: bool -> bf16 (0/1 exact); other dtypes stream natively
    # and are cast to f32 inside the kernel (no full f32 label pass in HBM).
    if label.dtype == jnp.bool_:
        label = label.astype(jnp.bfloat16)

    x_flat = jnp.ravel(logits)   # zero-copy reshape
    y_flat = jnp.ravel(label)

    # Fast path: no padding / no HBM copy when total is lane-divisible.
    padded_total = _round_up(total, LANES)
    pad = padded_total - total
    if pad:
        # Rare fallback (total % 128 != 0): tiny pad with exactly-zero-loss
        # elements (logits=0, label=0.5 -> probs == label -> coeff == 0).
        if not jnp.issubdtype(y_flat.dtype, jnp.floating):
            y_flat = y_flat.astype(jnp.bfloat16)
        x_flat = jnp.concatenate([x_flat, jnp.zeros((pad,), x_flat.dtype)])
        y_flat = jnp.concatenate([y_flat, jnp.full((pad,), 0.5, y_flat.dtype)])

    rows = padded_total // LANES
    x2 = x_flat.reshape(rows, LANES)
    y2 = y_flat.reshape(rows, LANES)

    # Row-block size: up to 4096 rows -> 2 MiB f32 per input block (double-buffered
    # 2-input footprint ~8 MiB; well under the explicit 48 MiB VMEM limit and
    # within v5e/v6e/v7x physical VMEM).
    TR_TARGET = 4096
    TR = min(TR_TARGET, _round_up(rows, 8))
    num_blocks = _cdiv(rows, TR)

    NP = max(1, min(_num_tensorcores(), num_blocks))  # avoid round-up waste on 1-TC chips
    blocks_per_p = _cdiv(num_blocks, NP)
    last_block = num_blocks - 1
    grid = (NP, blocks_per_p)

    def in_map(p, i):
        # Clamp so over-provisioned steps re-read a valid block; the in-kernel
        # tail mask zeroes their contribution.
        return (jnp.minimum(p * blocks_per_p + i, last_block), 0)

    partials = pl.pallas_call(
        _make_focal_kernel(TR, blocks_per_p, rows),
        out_shape=jax.ShapeDtypeStruct((NP, 8, LANES), jnp.float32),
        grid_spec=pltpu.PrefetchScalarGridSpec(
            num_scalar_prefetch=0,
            grid=grid,
            in_specs=[
                pl.BlockSpec((TR, LANES), in_map),
                pl.BlockSpec((TR, LANES), in_map),
            ],
            out_specs=pl.BlockSpec((1, 8, LANES), lambda p, i: (p, 0, 0)),
        ),
        compiler_params=pltpu.CompilerParams(
            dimension_semantics=("parallel", "arbitrary"),
            vmem_limit_bytes=48 * 1024 * 1024,
        ),
    )(x2, y2)

    loss_sum = jnp.sum(partials)  # single final cross-lane reduce, outside the kernel

    if reduction == "mean":
        return loss_sum / jnp.float32(total)
    if reduction == "sum":
        return loss_sum
    raise NotImplementedError("reduction='none' not supported in this kernel")
    # TODO(synk): reduction='none' would need a full-shape output instead of a scalar.


def _focal_loss_ref(logits, label):
    """Faithful JAX translation of the PyTorch module (mean reduction)."""
    x = logits.astype(jnp.float32)
    y = label.astype(jnp.float32)
    probs = jax.nn.sigmoid(x)
    coeff = -jnp.power(jnp.abs(y - probs), GAMMA)
    sp_neg = jnp.where(-x > 50.0, x, -jnp.log1p(jnp.exp(-x)))
    sp_pos = jnp.where(x > 50.0, x, jnp.log1p(jnp.exp(x)))
    log_probs = jnp.where(x >= 0.0, sp_neg, x - sp_pos)
    log_1_probs = jnp.where(x >= 0.0, -x + sp_neg, -sp_pos)
    loss = y * ALPHA * log_probs + (1.0 - y) * (1.0 - ALPHA) * log_1_probs
    loss = loss * coeff
    return jnp.mean(loss)


if __name__ == "__main__":
    key = jax.random.PRNGKey(0)
    k1, k2 = jax.random.split(key)
    # small NCHW shapes: batch=2, channels=4, spatial=16x16
    logits = jax.random.normal(k1, (2, 4, 16, 16), dtype=jnp.float32) * 3.0
    label = jax.random.bernoulli(k2, 0.5, (2, 4, 16, 16)).astype(jnp.float32)

    out = focal_loss_v1(logits, label, reduction="mean")
    out = jax.block_until_ready(out)

    ref = jax.block_until_ready(_focal_loss_ref(logits, label))
    np.testing.assert_allclose(np.asarray(out), np.asarray(ref), rtol=1e-5, atol=1e-6)

    print("KERNEL_OK")
</pallas_src>

<mosaic_0001>
module attributes {stable_mosaic.version = 11 : i64} {
  func.func @kernel(%arg0: i32, %arg1: i32, %arg2: memref<16x128xf32, #tpu.memory_space<vmem>>, %arg3: memref<16x128xf32, #tpu.memory_space<vmem>>, %arg4: memref<1x8x128xf32, #tpu.memory_space<vmem>>) attributes {dimension_semantics = [#tpu.dimension_semantics<parallel>, #tpu.dimension_semantics<arbitrary>], iteration_bounds = array<i64: 1, 1>, scalar_prefetch = 0 : i64, scratch_operands = 0 : i64, tpu.core_type = #tpu.core_type<tc>, window_params = [{transform_indices = @transform_0, window_bounds = array<i64: 16, 128>}, {transform_indices = @transform_1, window_bounds = array<i64: 16, 128>}, {transform_indices = @transform_2, window_bounds = array<i64: 1, 8, 128>}]} {
    %c0_i32 = arith.constant 0 : i32
    %0 = arith.cmpi eq, %arg1, %c0_i32 : i32
    %1 = arith.extui %0 : i1 to i32
    %c0_i32_0 = arith.constant 0 : i32
    %2 = arith.cmpi ne, %1, %c0_i32_0 : i32
    scf.if %2 {
      %cst_15 = arith.constant 0.000000e+00 : f32
      %47 = vector.broadcast %cst_15 : f32 to vector<1x8x128xf32>
      %c0_16 = arith.constant 0 : index
      %c0_17 = arith.constant 0 : index
      %c0_18 = arith.constant 0 : index
      %48 = vector.load %arg4[%c0_16, %c0_17, %c0_18] : memref<1x8x128xf32, #tpu.memory_space<vmem>>, vector<1x8x128xf32>
      tpu.vector_store %arg4[%c0_16, %c0_17, %c0_18], %47 {strides = array<i32>} : memref<1x8x128xf32, #tpu.memory_space<vmem>>, vector<1x8x128xf32>,
    } else {
    }
    %c0 = arith.constant 0 : index
    %c0_1 = arith.constant 0 : index
    %3 = vector.load %arg2[%c0, %c0_1] : memref<16x128xf32, #tpu.memory_space<vmem>>, vector<16x128xf32>
    %c0_2 = arith.constant 0 : index
    %c0_3 = arith.constant 0 : index
    %4 = vector.load %arg3[%c0_2, %c0_3] : memref<16x128xf32, #tpu.memory_space<vmem>>, vector<16x128xf32>
    %5 = math.absf %3 : vector<16x128xf32>
    %cst = arith.constant 0.000000e+00 : f32
    %6 = vector.broadcast %cst : f32 to vector<16x128xf32>
    %7 = arith.subf %6, %5 : vector<16x128xf32>
    %8 = math.exp %7 : vector<16x128xf32>
    %9 = math.log1p %8 : vector<16x128xf32>
    %cst_4 = arith.constant 1.000000e+00 : f32
    %10 = vector.broadcast %cst_4 : f32 to vector<16x128xf32>
    %11 = arith.addf %10, %8 : vector<16x128xf32>
    %12 = tpu.reciprocal %11 {approx = true} : vector<16x128xf32> -> vector<16x128xf32>
    %13 = arith.mulf %11, %12 : vector<16x128xf32>
    %cst_5 = arith.constant 2.000000e+00 : f32
    %14 = vector.broadcast %cst_5 : f32 to vector<16x128xf32>
    %15 = arith.subf %14, %13 : vector<16x128xf32>
    %16 = arith.mulf %12, %15 : vector<16x128xf32>
    %cst_6 = arith.constant 0.000000e+00 : f32
    %17 = vector.broadcast %cst_6 : f32 to vector<16x128xf32>
    %18 = arith.cmpf oge, %3, %17 : vector<16x128xf32>
    %19 = arith.mulf %8, %16 : vector<16x128xf32>
    %20 = arith.select %18, %16, %19 : vector<16x128xi1>, vector<16x128xf32>
    %cst_7 = arith.constant 0.000000e+00 : f32
    %21 = vector.broadcast %cst_7 : f32 to vector<16x128xf32>
    %22 = arith.minimumf %3, %21 : vector<16x128xf32>
    %23 = arith.subf %22, %9 : vector<16x128xf32>
    %24 = arith.subf %23, %3 : vector<16x128xf32>
    %25 = arith.subf %4, %20 : vector<16x128xf32>
    %26 = arith.mulf %25, %25 : vector<16x128xf32>
    %cst_8 = arith.constant 0.000000e+00 : f32
    %27 = vector.broadcast %cst_8 : f32 to vector<16x128xf32>
    %28 = arith.subf %27, %26 : vector<16x128xf32>
    %cst_9 = arith.constant 7.500000e-01 : f32
    %29 = vector.broadcast %cst_9 : f32 to vector<16x128xf32>
    %30 = arith.mulf %29, %24 : vector<16x128xf32>
    %cst_10 = arith.constant 2.500000e-01 : f32
    %31 = vector.broadcast %cst_10 : f32 to vector<16x128xf32>
    %32 = arith.mulf %31, %23 : vector<16x128xf32>
    %33 = arith.subf %32, %30 : vector<16x128xf32>
    %34 = arith.mulf %4, %33 : vector<16x128xf32>
    %35 = arith.addf %30, %34 : vector<16x128xf32>
    %36 = arith.mulf %28, %35 : vector<16x128xf32>
    %c1_i32 = arith.constant 1 : i32
    %37 = arith.muli %arg0, %c1_i32 : i32
    %38 = arith.addi %37, %arg1 : i32
    %c16_i32 = arith.constant 16 : i32
    %39 = arith.muli %38, %c16_i32 : i32
    %c16_i32_11 = arith.constant 16 : i32
    %40 = arith.addi %39, %c16_i32_11 : i32
    %c16_i32_12 = arith.constant 16 : i32
    %41 = arith.cmpi sle, %40, %c16_i32_12 : i32
    %42 = arith.extui %41 : i1 to i32
    %c0_i32_13 = arith.constant 0 : i32
    %43 = arith.cmpi ne, %42, %c0_i32_13 : i32
    scf.if %43 {
      %c0_15 = arith.constant 0 : index
      %c0_16 = arith.constant 0 : index
      %c0_17 = arith.constant 0 : index
      %47 = vector.load %arg4[%c0_15, %c0_16, %c0_17] : memref<1x8x128xf32, #tpu.memory_space<vmem>>, vector<1x8x128xf32>
      %48 = vector.shape_cast %36 : vector<16x128xf32> to vector<1x2x8x128xf32>
      %cst_18 = arith.constant dense<0.000000e+00> : vector<1x8x128xf32>
      %49 = vector.multi_reduction <add>, %48, %cst_18 [1] : vector<1x2x8x128xf32> to vector<1x8x128xf32>
      %50 = arith.addf %47, %49 : vector<1x8x128xf32>
      %c0_19 = arith.constant 0 : index
      %c0_20 = arith.constant 0 : index
      %c0_21 = arith.constant 0 : index
      %51 = vector.load %arg4[%c0_19, %c0_20, %c0_21] : memref<1x8x128xf32, #tpu.memory_space<vmem>>, vector<1x8x128xf32>
      tpu.vector_store %arg4[%c0_19, %c0_20, %c0_21], %50 {strides = array<i32>} : memref<1x8x128xf32, #tpu.memory_space<vmem>>, vector<1x8x128xf32>,
    } else {
    }
    %true = arith.constant true
    %44 = arith.xori %41, %true : i1
    %45 = arith.extui %44 : i1 to i32
    %c0_i32_14 = arith.constant 0 : i32
    %46 = arith.cmpi ne, %45, %c0_i32_14 : i32
    scf.if %46 {
      %47 = tpu.iota {dimensions = array<i32: 0>} : vector<16x128xi32>
      %c16_i32_15 = arith.constant 16 : i32
      %48 = arith.subi %c16_i32_15, %39 : i32
      %49 = vector.broadcast %48 : i32 to vector<16x128xi32>
      %50 = arith.cmpi slt, %47, %49 : vector<16x128xi32>
      %cst_16 = arith.constant 0.000000e+00 : f32
      %51 = vector.broadcast %cst_16 : f32 to vector<16x128xf32>
      %52 = arith.select %50, %36, %51 : vector<16x128xi1>, vector<16x128xf32>
      %c0_17 = arith.constant 0 : index
      %c0_18 = arith.constant 0 : index
      %c0_19 = arith.constant 0 : index
      %53 = vector.load %arg4[%c0_17, %c0_18, %c0_19] : memref<1x8x128xf32, #tpu.memory_space<vmem>>, vector<1x8x128xf32>
      %54 = vector.shape_cast %52 : vector<16x128xf32> to vector<1x2x8x128xf32>
      %cst_20 = arith.constant dense<0.000000e+00> : vector<1x8x128xf32>
      %55 = vector.multi_reduction <add>, %54, %cst_20 [1] : vector<1x2x8x128xf32> to vector<1x8x128xf32>
      %56 = arith.addf %53, %55 : vector<1x8x128xf32>
      %c0_21 = arith.constant 0 : index
      %c0_22 = arith.constant 0 : index
      %c0_23 = arith.constant 0 : index
      %57 = vector.load %arg4[%c0_21, %c0_22, %c0_23] : memref<1x8x128xf32, #tpu.memory_space<vmem>>, vector<1x8x128xf32>
      tpu.vector_store %arg4[%c0_21, %c0_22, %c0_23], %56 {strides = array<i32>} : memref<1x8x128xf32, #tpu.memory_space<vmem>>, vector<1x8x128xf32>,
    } else {
    }
    return
  }
  func.func @transform_0(%arg0: i32, %arg1: i32) -> (i32, i32) {
    %c1_i32 = arith.constant 1 : i32
    %0 = arith.muli %arg0, %c1_i32 : i32
    %1 = arith.addi %0, %arg1 : i32
    %c0_i32 = arith.constant 0 : i32
    %2 = arith.minsi %1, %c0_i32 : i32
    %c0_i32_0 = arith.constant 0 : i32
    %c0_i32_1 = arith.constant 0 : i32
    return %2, %c0_i32_0 : i32, i32
  }
  func.func @transform_1(%arg0: i32, %arg1: i32) -> (i32, i32) {
    %c1_i32 = arith.constant 1 : i32
    %0 = arith.muli %arg0, %c1_i32 : i32
    %1 = arith.addi %0, %arg1 : i32
    %c0_i32 = arith.constant 0 : i32
    %2 = arith.minsi %1, %c0_i32 : i32
    %c0_i32_0 = arith.constant 0 : i32
    %c0_i32_1 = arith.constant 0 : i32
    return %2, %c0_i32_0 : i32, i32
  }
  func.func @transform_2(%arg0: i32, %arg1: i32) -> (i32, i32, i32) {
    %c0_i32 = arith.constant 0 : i32
    %c0_i32_0 = arith.constant 0 : i32
    %c0_i32_1 = arith.constant 0 : i32
    return %arg0, %c0_i32, %c0_i32_0 : i32, i32, i32
  }
}

</mosaic_0001>

<llo_original>
// kernel: tpu_custom_call.1
$region0: #{tpu_custom_call.1}
  #allocation0 [shape = 'u32[]', space=smem, size = 0x4, offset = 0x4, fixed_abs, tag = 'smem constant byte address 0x4 - core index']
  #allocation1 [shape = 'u32[72,128]{1,0:T(1,128)}', space=vmem, size = 0x9000, scoped, tag = 'internal scratch']
  %s0 = inlined_call_operand.hbm [shape: f32[16,128], index: 0, kind: input, shape index: {}]
  %s1 = inlined_call_operand.hbm [shape: f32[16,128], index: 1, kind: input, shape index: {}]
  %s2 = inlined_call_operand.hbm [shape: f32[1,8,128], index: 2, kind: output, shape index: {}]
  %s3 = sld [smem:[#allocation0]]
  $region38: #{tpu_custom_call.1} parent=0
    _
  %s5 = ssub.s32 1, %s3
  %s6 = scalar_select 0, %s5, %s3
  $region1: #{tpu_custom_call.1} parent=0
    #allocation2 [shape = 'u8[8192]{0}', space=vmem, size = 0x2000, scoped, tag = 'input window, operand 0, single buffered']
    #allocation3 [shape = 's32[1]{0}', space=sflag, size = 0x4, scoped, tag = 'scoped memory for tpu_custom_call.1']
    #allocation4 [shape = 's32[1]{0}', space=sflag, size = 0x4, scoped, tag = 'scoped memory for tpu_custom_call.1']
    #allocation5 [shape = 'u8[8192]{0}', space=vmem, size = 0x2000, scoped, tag = 'input window, operand 1, single buffered']
    #allocation6 [shape = 's32[1]{0}', space=sflag, size = 0x4, scoped, tag = 'scoped memory for tpu_custom_call.1']
    #allocation7 [shape = 'u8[4096]{0}', space=vmem, size = 0x1000, scoped, tag = 'output window, operand 0, single buffered']
    %7 = vsyncpa [#allocation3], 0
    %8 = vsyncpa [#allocation6], 0
    %9 = vsyncpa [#allocation4], 0
    // Predicated region
    $region2: #{tpu_custom_call.1} parent=1 // pred_check
      _
    $region3: #{tpu_custom_call.1} parent=1 // pred_check_branch
      %11 = sbr.rel (0) target = $region5
    $region4: #{tpu_custom_call.1} parent=1 // pred_region
      %s12 = sadd.s32 0, 0
      %p13 = scmp.lt.s32.totalorder %s12, 0
      %s14 = scalar_select %p13, %s12, 0
      %s15 = smul.u32 2, %s14
      %17 = vsyncadd [#allocation3], 0
      %s18 = smul.addr %s15, 8
      %s19 = scalar_lea.hbm %s0, %s18
      %s20 = sshll.u32 %s19, 4
      %s21 = int_to_ptr.hbm [resolvable:$true] %s20
      %s22 = sshll.u32 [#allocation2], 4
      %s23 = int_to_ptr.vmem [resolvable:$true] %s22
      %28 = dma.hbm_to_vmem [thread:$0]  %s21, 256, %s23, [#allocation3], 128, 128, 8
    $region5: #{tpu_custom_call.1} parent=1 // pred_fallthru
      _
    // Predicated region
    $region6: #{tpu_custom_call.1} parent=1 // pred_check
      _
    $region7: #{tpu_custom_call.1} parent=1 // pred_check_branch
      %30 = sbr.rel (0) target = $region9
    $region8: #{tpu_custom_call.1} parent=1 // pred_region
      %s31 = sadd.s32 0, 0
      %p32 = scmp.lt.s32.totalorder %s31, 0
      %s33 = scalar_select %p32, %s31, 0
      %s34 = smul.u32 2, %s33
      %36 = vsyncadd [#allocation6], 0
      %s37 = smul.addr %s34, 8
      %s38 = scalar_lea.hbm %s1, %s37
      %s39 = sshll.u32 %s38, 4
      %s40 = int_to_ptr.hbm [resolvable:$true] %s39
      %s41 = sshll.u32 [#allocation5], 4
      %s42 = int_to_ptr.vmem [resolvable:$true] %s41
      %47 = dma.hbm_to_vmem [thread:$0]  %s40, 256, %s42, [#allocation6], 128, 128, 8
    $region9: #{tpu_custom_call.1} parent=1 // pred_fallthru
      _
    // Predicated region
    $region10: #{tpu_custom_call.1} parent=1 // pred_check
      _
    $region11: #{tpu_custom_call.1} parent=1 // pred_check_branch
      %49 = sbr.rel (0) target = $region13
    $region12: #{tpu_custom_call.1} parent=1 // pred_region
      %51 = dma.done [#allocation3], 256
    $region13: #{tpu_custom_call.1} parent=1 // pred_fallthru
      _
    // Predicated region
    $region14: #{tpu_custom_call.1} parent=1 // pred_check
      _
    $region15: #{tpu_custom_call.1} parent=1 // pred_check_branch
      %53 = sbr.rel (0) target = $region17
    $region16: #{tpu_custom_call.1} parent=1 // pred_region
      %55 = dma.done [#allocation6], 256
    $region17: #{tpu_custom_call.1} parent=1 // pred_fallthru
      _
    %s56 = sadd.s32 0, 0
    %p57 = scmp.lt.s32.totalorder %s56, 0
    %s58 = scalar_select %p57, %s56, 0
    %s59 = smul.u32 2, %s58
    %s60 = sadd.s32 0, 0
    %p61 = scmp.lt.s32.totalorder %s60, 0
    %s62 = scalar_select %p61, %s60, 0
    %s63 = smul.u32 2, %s62
    %p64 = scmp.eq.s32.totalorder 0, 0
    // Predicated region
    $region18: #{tpu_custom_call.1} parent=1 // pred_check
      %p65 = pneg %p64
    $region19: #{tpu_custom_call.1} parent=1 // pred_check_branch
      %67 = sbr.rel (%p65) target = $region21
    $region20: #{tpu_custom_call.1} parent=1 // pred_region
      %68 = vst [vmem:[#allocation7] sm:$0xff] 0.0
    $region21: #{tpu_custom_call.1} parent=1 // pred_fallthru
      _
    %v69 = vld [vmem:[#allocation2] sm:$0xff]
    %v70 = vld [vmem:[#allocation2 + $0x8] sm:$0xff]
    %v71 = vld [vmem:[#allocation5] sm:$0xff]
    %v72 = vld [vmem:[#allocation5 + $0x8] sm:$0xff]
    %v73 = vand.u32 2147483647, %v69
    %v74 = vand.u32 2147483647, %v70
    %v75 = vsub.f32 0.0, %v73
    %v76 = vsub.f32 0.0, %v74
    %v77 = vmul.f32 %v75, 1.442695
    %v78 = vpow.pop %v77
    %v79 = vmul.f32 %v76, 1.442695
    %v80 = vpow.pop %v79
    %v81 = vadd.f32 %v78, 1.0
    %v82 = vlog2.pop %v81
    %v83 = vmul.f32 %v82, 0.6931472
    %v84 = vmul.f32 -0.5, %v78
    %v85 = vadd.f32 %v84, 1.0
    %v86 = vmul.f32 %v85, %v78
    %v87 = vand.u32 2147483647, %v78
    %vm88 = vcmp.lt.f32.partialorder %v87, 0.0004427343
    %v89 = vsel %vm88, %v86, %v83
    %v90 = vadd.f32 %v80, 1.0
    %v91 = vlog2.pop %v90
    %v92 = vmul.f32 %v91, 0.6931472
    %v93 = vmul.f32 -0.5, %v80
    %v94 = vadd.f32 %v93, 1.0
    %v95 = vmul.f32 %v94, %v80
    %v96 = vand.u32 2147483647, %v80
    %vm97 = vcmp.lt.f32.partialorder %v96, 0.0004427343
    %v98 = vsel %vm97, %v95, %v92
    %v99 = vadd.f32 %v78, 1.0
    %v100 = vadd.f32 %v80, 1.0
    %v101 = vrcp.pop %v99
    %v102 = vrcp.pop %v100
    %v103 = vmul.f32 %v99, %v101
    %v104 = vmul.f32 %v100, %v102
    %v105 = vsub.f32 2.0, %v103
    %v106 = vsub.f32 2.0, %v104
    %v107 = vmul.f32 %v101, %v105
    %v108 = vmul.f32 %v102, %v106
    %vm109 = vcmp.ge.f32.partialorder %v69, 0.0
    %vm110 = vcmp.ge.f32.partialorder %v70, 0.0
    %v111 = vmul.f32 %v78, %v107
    %v112 = vmul.f32 %v80, %v108
    %v113 = vsel %vm109, %v107, %v111
    %v114 = vsel %vm110, %v108, %v112
    %v115 = vmin.f32 %v69, 0.0
    %v116 = vmin.f32 %v70, 0.0
    %v117 = vsub.f32 %v115, %v89
    %v118 = vsub.f32 %v116, %v98
    %v119 = vsub.f32 %v117, %v69
    %v120 = vsub.f32 %v118, %v70
    %v121 = vsub.f32 %v71, %v113
    %v122 = vsub.f32 %v72, %v114
    %v123 = vmul.f32 %v121, %v121
    %v124 = vmul.f32 %v122, %v122
    %v125 = vsub.f32 0.0, %v123
    %v126 = vsub.f32 0.0, %v124
    %v127 = vmul.f32 %v119, 0.75
    %v128 = vmul.f32 %v120, 0.75
    %v129 = vmul.f32 %v117, 0.25
    %v130 = vmul.f32 %v118, 0.25
    %v131 = vsub.f32 %v129, %v127
    %v132 = vsub.f32 %v130, %v128
    %v133 = vmul.f32 %v71, %v131
    %v134 = vmul.f32 %v72, %v132
    %v135 = vadd.f32 %v127, %v133
    %v136 = vadd.f32 %v128, %v134
    %v137 = vmul.f32 %v125, %v135
    %v138 = vmul.f32 %v126, %v136
    %s139 = sadd.s32 0, 0
    %s140 = smul.u32 %s139, 16
    %s141 = sadd.s32 %s140, 16
    %p142 = scmp.le.s32.totalorder %s141, 16
    // Predicated region
    $region22: #{tpu_custom_call.1} parent=1 // pred_check
      %p143 = pneg %p142
    $region23: #{tpu_custom_call.1} parent=1 // pred_check_branch
      %145 = sbr.rel (%p143) target = $region25
    $region24: #{tpu_custom_call.1} parent=1 // pred_region
      %v146 = vld [vmem:[#allocation7] sm:$0xff]
      %v147 = vadd.f32 %v137, %v138
      %v148 = vadd.f32 %v146, %v147
      %149 = vst [vmem:[#allocation7] sm:$0xff] %v148
    $region25: #{tpu_custom_call.1} parent=1 // pred_fallthru
      _
    %p150 = scmp.gt.s32.totalorder %s141, 16
    // Predicated region
    $region26: #{tpu_custom_call.1} parent=1 // pred_check
      %p151 = pneg %p150
    $region27: #{tpu_custom_call.1} parent=1 // pred_check_branch
      %153 = sbr.rel (%p151) target = $region29
    $region28: #{tpu_custom_call.1} parent=1 // pred_region
      %v154 = vlaneseq
      %v155 = vshrl.u32 %v154, 7
      %v156 = vadd.s32 %v155, 8
      %s157 = ssub.s32 16, %s140
      %v158 = vstv %s157
      %vm159 = vcmp.lt.s32.totalorder %v155, %v158
      %vm160 = vcmp.lt.s32.totalorder %v156, %v158
      %v161 = vsel %vm159, %v137, 0.0
      %v162 = vsel %vm160, %v138, 0.0
      %v163 = vld [vmem:[#allocation7] sm:$0xff]
      %v164 = vadd.f32 %v161, %v162
      %v165 = vadd.f32 %v163, %v164
      %166 = vst [vmem:[#allocation7] sm:$0xff] %v165
    $region29: #{tpu_custom_call.1} parent=1 // pred_fallthru
      _
    // Predicated region
    $region30: #{tpu_custom_call.1} parent=1 // pred_check
      _
    $region31: #{tpu_custom_call.1} parent=1 // pred_check_branch
      %168 = sbr.rel (0) target = $region33
    $region32: #{tpu_custom_call.1} parent=1 // pred_region
      %170 = vsyncadd [#allocation4], 0
      %s172 = sshll.u32 [#allocation7], 4
      %s173 = int_to_ptr.vmem [resolvable:$true] %s172
      %s174 = sshll.u32 %s2, 4
      %s175 = int_to_ptr.hbm [resolvable:$true] %s174
      %177 = dma.vmem_to_hbm [thread:$0]  %s173, 128, %s175, [#allocation4]
    $region33: #{tpu_custom_call.1} parent=1 // pred_fallthru
      _
    // Predicated region
    $region34: #{tpu_custom_call.1} parent=1 // pred_check
      _
    $region35: #{tpu_custom_call.1} parent=1 // pred_check_branch
      %179 = sbr.rel (0) target = $region37
    $region36: #{tpu_custom_call.1} parent=1 // pred_region
      %181 = dma.done [#allocation4], 128
    $region37: #{tpu_custom_call.1} parent=1 // pred_fallthru
      _
    %182 = vsyncpa [#allocation3], 1
    %183 = vsyncpa [#allocation6], 1
    %184 = vsyncpa [#allocation4], 1

</llo_original>
